<compile_context>
chip_gen: v5e
topology: v5e:2x2
jax: 0.10.0
libtpu: 0.0.40
codegen_flags: <defaults>
</compile_context>

<pallas_src>
import jax
import jax.numpy as jnp
from jax.experimental import pallas as pl
from jax.experimental.pallas import tpu as pltpu


_VOCAB_CHUNK = 512            # table rows per in-kernel chunk (bounds one-hot temp)
_TABLE_SINGLE_BUFFER_OK = None  # lazily probed: does this jax honor pl.Buffered(1)?


def _round_up(x, m):
    return (x + m - 1) // m * m


def precompute_combined_table(params):
    """Per-node [item_emb | masked-mean feature emb] table, shape (n_node_pad, H).

    item_feature is a frozen buffer, so this O(n_node * F * d) gather + masked
    mean depends only on params.  Call once per parameter update (not per
    forward); differentiable w.r.t. embedding and feature_embed.
    """
    item_tbl = params["embedding"]                 # (n_node, d) f32
    featid_tbl = params["item_feature"]            # (n_node, F) f32, integer-valued
    feat_tbl = params["feature_embed"]             # (feat_dim, d) f32
    fid = featid_tbl.astype(jnp.int32)             # ".long()"
    mask = (fid != 0).astype(jnp.float32)          # (n_node, F)
    feat_emb = feat_tbl[fid]                       # (n_node, F, d)
    mean_tbl = (feat_emb * mask[..., None]).sum(1) / (mask.sum(1, keepdims=True) + 1e-16)
    combined = jnp.concatenate([item_tbl, mean_tbl], axis=1)     # (n_node, 2d) == (n_node, H)

    # Pad rows for sublane alignment / whole chunks; padded rows are never matched
    # because ids are clamped to [0, n_node-1] in the wrapper.
    n_node = combined.shape[0]
    n_pad = _round_up(n_node, 8)
    if n_pad > _VOCAB_CHUNK:
        n_pad = _round_up(n_pad, _VOCAB_CHUNK)
    if n_pad != n_node:
        combined = jnp.pad(combined, ((0, n_pad - n_node), (0, 0)))
    return combined


def _make_lookup_kernel(k, chunk, n_chunks):
    """out[r, j*H:(j+1)*H] = table[ids[r, j]] via chunked one-hot MXU lookups."""

    def kernel(ids_ref, tbl_ref, out_ref):
        r = ids_ref.shape[0]

        def lookup_chunk(base):
            tbl_c = tbl_ref[pl.ds(base, chunk), :]                       # (chunk, H)
            col = base + jax.lax.broadcasted_iota(jnp.int32, (r, chunk), 1)
            slots = []
            for j in range(k):                                           # k <= 4, static unroll
                onehot = (ids_ref[:, j:j + 1] == col).astype(jnp.float32)
                slots.append(jnp.dot(onehot, tbl_c,
                                     preferred_element_type=jnp.float32))
            return jnp.concatenate(slots, axis=-1) if k > 1 else slots[0]

        if n_chunks == 1:
            out_ref[...] = lookup_chunk(0)
        else:
            acc = lookup_chunk(0)
            acc = jax.lax.fori_loop(
                1, n_chunks,
                lambda c, a: a + lookup_chunk(pl.multiple_of(c * chunk, chunk)),
                acc)
            out_ref[...] = acc

    return kernel


def session_graph_forward(inputs, A, params, *, tile_tokens=2048, combined=None):
    """SessionGraph.forward: forward(inputs, A) == self.embed(inputs); A is unused."""
    global _TABLE_SINGLE_BUFFER_OK
    del A
    if combined is None:
        # Callers should precompute this once per parameter update and pass it in.
        combined = precompute_combined_table(params)

    n_node = params["embedding"].shape[0]          # un-padded vocab (for id clamping)
    n_pad, d2 = combined.shape
    chunk = n_pad if n_pad <= _VOCAB_CHUNK else _VOCAB_CHUNK
    n_chunks = n_pad // chunk

    b, s = inputs.shape
    n = b * s

    # Fuse k consecutive tokens per stored output row so the HBM store path is
    # lane-dense (k*H >= 128 -> unmasked vst).
    k = 128 // d2 if (d2 < 128 and 128 % d2 == 0) else 1
    group = 8 * k                                   # tokens covered by 8 output sublanes

    # Generation-aware VMEM budget (v7x: 64 MiB/TensorCore, v5e/v6e: 128 MiB).
    try:
        vmem_capacity = int(pltpu.get_tpu_info().vmem_capacity_bytes)
    except Exception:
        vmem_capacity = 64 << 20                    # conservative (v7x) fallback
    vmem_cap = int(0.75 * vmem_capacity)

    def vmem_bytes(tile_rows, table_bufs):
        return 4 * (table_bufs * n_pad * d2         # resident combined table
                    + 2 * tile_rows * k             # ids blocks (double-buffered)
                    + 2 * tile_rows * k * d2        # output blocks (double-buffered)
                    + k * tile_rows * chunk         # in-kernel one-hot temporaries
                    + tile_rows * k * d2            # accumulator / concat temp
                    + chunk * d2                    # table chunk slice copy
                    ) + (2 << 20)                   # headroom

    # Token tiling: big tiles amortize the ~0.35us/step pipeline overhead, but keep
    # >= 2 grid programs when there is enough work so ("parallel",) can shard
    # across v7x's two TensorCores.
    n_grp = _round_up(n, group)
    want = min(tile_tokens, n_grp)
    if n_grp > group:
        want = min(want, _round_up((n_grp + 1) // 2, group))
    tile_tokens = max(group, want // group * group)

    tile_rows = tile_tokens // k
    while tile_rows > 8 and vmem_bytes(tile_rows, 1) > vmem_cap:
        tile_rows = max(8, (tile_rows // 2 + 7) // 8 * 8)
    tile_tokens = tile_rows * k

    np_tok = _round_up(n, tile_tokens)
    rows = np_tok // k
    grid = (rows // tile_rows,)

    # ids: clamp (jnp-gather OOB semantics), pad to np_tok, group k tokens per row.
    # Padded tokens look up node 0 (wasted work, not wrong) and are dropped below.
    ids = jnp.clip(inputs.reshape(-1).astype(jnp.int32), 0, n_node - 1)
    ids = jnp.pad(ids, (0, np_tok - n)).reshape(rows, k)

    kernel = _make_lookup_kernel(k, chunk, n_chunks)
    out_shape = jax.ShapeDtypeStruct((rows, k * d2), jnp.float32)
    ids_spec = pl.BlockSpec((tile_rows, k), lambda i: (i, 0))
    out_spec = pl.BlockSpec((tile_rows, k * d2), lambda i: (i, 0))
    vmem_limit = int(min(max(vmem_bytes(tile_rows, 2), 16 << 20), vmem_cap))
    cparams = pltpu.CompilerParams(dimension_semantics=("parallel",),
                                   vmem_limit_bytes=vmem_limit)

    # TODO(synk): at production vocab sizes the VMEM-resident one-hot lookup is
    # still O(n_node) compute per token; switch to a scalar-prefetch + manual-DMA
    # row gather (table kept in HBM via memory_space=pl.ANY) for that regime.

    def run(table_spec):
        return pl.pallas_call(
            kernel,
            out_shape=out_shape,
            grid=grid,
            in_specs=[ids_spec, table_spec],
            out_specs=out_spec,
            compiler_params=cparams,
        )(ids, combined)

    out = None
    if _TABLE_SINGLE_BUFFER_OK is not False:
        try:
            # Constant-index resident table -> single buffer (halves its VMEM cost).
            out = jax.block_until_ready(run(pl.BlockSpec(
                (n_pad, d2), lambda i: (0, 0), pipeline_mode=pl.Buffered(1))))
            _TABLE_SINGLE_BUFFER_OK = True
        except Exception:
            _TABLE_SINGLE_BUFFER_OK = False
            out = None
    if out is None:
        # Fallback: default double-buffered resident table (always supported).
        out = run(pl.BlockSpec((n_pad, d2), lambda i: (0, 0)))

    out = out.reshape(np_tok, d2)[:n]              # drop padded tokens (wrapper, free)
    return out.reshape(b, s, d2)


def session_graph_forward_ref(inputs, A, params):
    """Pure-JAX reference mirroring the PyTorch embed()."""
    del A
    item_tbl = params["embedding"]
    featid_tbl = params["item_feature"]
    feat_tbl = params["feature_embed"]
    b, s = inputs.shape
    item_emb = item_tbl[inputs]                                 # (b, s, d)
    fid = featid_tbl[inputs].astype(jnp.int32)                  # .long()
    fid = fid.reshape(b * s, -1)                                # (b*s, F)
    feat_emb = feat_tbl[fid]                                    # (b*s, F, d)
    mask = (fid != 0).astype(jnp.float32)
    mean = (feat_emb * mask[:, :, None]).sum(1) / (mask.sum(1, keepdims=True) + 1e-16)
    mean = mean.reshape(b, s, -1)
    return jnp.concatenate([item_emb, mean], axis=-1)


if __name__ == "__main__":
    hidden_size = 32            # opt.hiddenSize
    d = hidden_size // 2
    n_node = 50
    n_feat = 6                  # feature_ids.shape[1]
    feat_dim = 20               # feature_ids.max() + 1
    b, s = 2, 8                 # batch, session length

    key = jax.random.PRNGKey(0)
    k_emb, k_feat, k_fid, k_in = jax.random.split(key, 4)

    stdv = 1.0 / (hidden_size ** 0.5)
    params = {
        # reset_parameters(): uniform(-stdv, stdv)
        "embedding": jax.random.uniform(k_emb, (n_node, d), jnp.float32, -stdv, stdv),
        "feature_embed": jax.random.uniform(k_feat, (feat_dim, d), jnp.float32, -stdv, stdv),
        # frozen buffer holding integer feature ids (copied from the feature_ids array)
        # TODO(synk): PyTorch reset_parameters() would also clobber this frozen table
        # with uniform noise; deterministic integer ids keep the masked-mean path
        # meaningfully exercised.
        "item_feature": jax.random.randint(k_fid, (n_node, n_feat), 0, feat_dim).astype(jnp.float32),
    }

    inputs = jax.random.randint(k_in, (b, s), 0, n_node).astype(jnp.int32)
    A = jnp.zeros((b, s, 2 * s), jnp.float32)   # session adjacency; unused by forward()

    # Params-only precompute: done once per parameter update, reused across calls.
    combined = jax.block_until_ready(precompute_combined_table(params))

    out = session_graph_forward(inputs, A, params, combined=combined)
    out = jax.block_until_ready(out)

    ref = session_graph_forward_ref(inputs, A, params)
    assert out.shape == (b, s, hidden_size)
    if not jnp.allclose(out, ref, atol=1e-5, rtol=1e-5):
        raise SystemExit("mismatch vs reference")
    print("KERNEL_OK")
</pallas_src>

<mosaic_0001>
module attributes {stable_mosaic.version = 11 : i64} {
  func.func @kernel(%arg0: i32, %arg1: memref<8x4xi32, #tpu.memory_space<vmem>>, %arg2: memref<56x32xf32, #tpu.memory_space<vmem>>, %arg3: memref<8x128xf32, #tpu.memory_space<vmem>>) attributes {dimension_semantics = [#tpu.dimension_semantics<parallel>], iteration_bounds = array<i64: 1>, scalar_prefetch = 0 : i64, scratch_operands = 0 : i64, tpu.core_type = #tpu.core_type<tc>, window_params = [{transform_indices = @transform_0, window_bounds = array<i64: 8, 4>}, {pipeline_mode = #tpu.pipeline_mode<synchronous>, transform_indices = @transform_1, window_bounds = array<i64: 56, 32>}, {transform_indices = @transform_2, window_bounds = array<i64: 8, 128>}]} {
    %c0 = arith.constant 0 : index
    %c0_0 = arith.constant 0 : index
    %0 = vector.load %arg2[%c0, %c0_0] : memref<56x32xf32, #tpu.memory_space<vmem>>, vector<56x32xf32>
    %1 = tpu.iota {dimensions = array<i32: 1>} : vector<8x56xi32>
    %c0_i32 = arith.constant 0 : i32
    %2 = vector.broadcast %c0_i32 : i32 to vector<8x56xi32>
    %3 = arith.addi %2, %1 : vector<8x56xi32>
    %c0_1 = arith.constant 0 : index
    %c0_2 = arith.constant 0 : index
    %4 = vector.load %arg1[%c0_1, %c0_2] : memref<8x4xi32, #tpu.memory_space<vmem>>, vector<8x1xi32>
    %5 = vector.broadcast %4 : vector<8x1xi32> to vector<8x56xi32>
    %6 = arith.cmpi eq, %5, %3 : vector<8x56xi32>
    %7 = arith.extui %6 : vector<8x56xi1> to vector<8x56xi32>
    %8 = arith.sitofp %7 : vector<8x56xi32> to vector<8x56xf32>
    %cst = arith.constant dense<0.000000e+00> : vector<8x32xf32>
    %9 = tpu.matmul %8, %0, %cst {dimension_numbers = #tpu.dot_dimension_numbers<[1], [0], [0], [1], [0, 0, 1, 1], [], []>} : vector<8x56xf32>, vector<56x32xf32>, vector<8x32xf32> -> vector<8x32xf32>
    %c0_3 = arith.constant 0 : index
    %c1 = arith.constant 1 : index
    %10 = vector.load %arg1[%c0_3, %c1] : memref<8x4xi32, #tpu.memory_space<vmem>>, vector<8x1xi32>
    %11 = vector.broadcast %10 : vector<8x1xi32> to vector<8x56xi32>
    %12 = arith.cmpi eq, %11, %3 : vector<8x56xi32>
    %13 = arith.extui %12 : vector<8x56xi1> to vector<8x56xi32>
    %14 = arith.sitofp %13 : vector<8x56xi32> to vector<8x56xf32>
    %cst_4 = arith.constant dense<0.000000e+00> : vector<8x32xf32>
    %15 = tpu.matmul %14, %0, %cst_4 {dimension_numbers = #tpu.dot_dimension_numbers<[1], [0], [0], [1], [0, 0, 1, 1], [], []>} : vector<8x56xf32>, vector<56x32xf32>, vector<8x32xf32> -> vector<8x32xf32>
    %c0_5 = arith.constant 0 : index
    %c2 = arith.constant 2 : index
    %16 = vector.load %arg1[%c0_5, %c2] : memref<8x4xi32, #tpu.memory_space<vmem>>, vector<8x1xi32>
    %17 = vector.broadcast %16 : vector<8x1xi32> to vector<8x56xi32>
    %18 = arith.cmpi eq, %17, %3 : vector<8x56xi32>
    %19 = arith.extui %18 : vector<8x56xi1> to vector<8x56xi32>
    %20 = arith.sitofp %19 : vector<8x56xi32> to vector<8x56xf32>
    %cst_6 = arith.constant dense<0.000000e+00> : vector<8x32xf32>
    %21 = tpu.matmul %20, %0, %cst_6 {dimension_numbers = #tpu.dot_dimension_numbers<[1], [0], [0], [1], [0, 0, 1, 1], [], []>} : vector<8x56xf32>, vector<56x32xf32>, vector<8x32xf32> -> vector<8x32xf32>
    %c0_7 = arith.constant 0 : index
    %c3 = arith.constant 3 : index
    %22 = vector.load %arg1[%c0_7, %c3] : memref<8x4xi32, #tpu.memory_space<vmem>>, vector<8x1xi32>
    %23 = vector.broadcast %22 : vector<8x1xi32> to vector<8x56xi32>
    %24 = arith.cmpi eq, %23, %3 : vector<8x56xi32>
    %25 = arith.extui %24 : vector<8x56xi1> to vector<8x56xi32>
    %26 = arith.sitofp %25 : vector<8x56xi32> to vector<8x56xf32>
    %cst_8 = arith.constant dense<0.000000e+00> : vector<8x32xf32>
    %27 = tpu.matmul %26, %0, %cst_8 {dimension_numbers = #tpu.dot_dimension_numbers<[1], [0], [0], [1], [0, 0, 1, 1], [], []>} : vector<8x56xf32>, vector<56x32xf32>, vector<8x32xf32> -> vector<8x32xf32>
    %28 = tpu.concatenate %9, %15, %21, %27 in 1 : vector<8x32xf32>, vector<8x32xf32>, vector<8x32xf32>, vector<8x32xf32> -> vector<8x128xf32>
    %c0_9 = arith.constant 0 : index
    %c0_10 = arith.constant 0 : index
    %29 = vector.load %arg3[%c0_9, %c0_10] : memref<8x128xf32, #tpu.memory_space<vmem>>, vector<8x128xf32>
    tpu.vector_store %arg3[%c0_9, %c0_10], %28 {strides = array<i32>} : memref<8x128xf32, #tpu.memory_space<vmem>>, vector<8x128xf32>,
    return
  }
  func.func @transform_0(%arg0: i32) -> (i32, i32) {
    %c0_i32 = arith.constant 0 : i32
    %c0_i32_0 = arith.constant 0 : i32
    return %arg0, %c0_i32 : i32, i32
  }
  func.func @transform_1(%arg0: i32) -> (i32, i32) {
    %c0_i32 = arith.constant 0 : i32
    %c0_i32_0 = arith.constant 0 : i32
    %c0_i32_1 = arith.constant 0 : i32
    return %c0_i32, %c0_i32_0 : i32, i32
  }
  func.func @transform_2(%arg0: i32) -> (i32, i32) {
    %c0_i32 = arith.constant 0 : i32
    %c0_i32_0 = arith.constant 0 : i32
    return %arg0, %c0_i32 : i32, i32
  }
}

module attributes {stable_mosaic.version = 11 : i64} {
  func.func @kernel(%arg0: i32, %arg1: memref<8x4xi32, #tpu.memory_space<vmem>>, %arg2: memref<56x32xf32, #tpu.memory_space<vmem>>, %arg3: memref<8x128xf32, #tpu.memory_space<vmem>>) attributes {dimension_semantics = [#tpu.dimension_semantics<parallel>], iteration_bounds = array<i64: 1>, scalar_prefetch = 0 : i64, scratch_operands = 0 : i64, tpu.core_type = #tpu.core_type<tc>, window_params = [{transform_indices = @transform_0, window_bounds = array<i64: 8, 4>}, {pipeline_mode = #tpu.pipeline_mode<synchronous>, transform_indices = @transform_1, window_bounds = array<i64: 56, 32>}, {transform_indices = @transform_2, window_bounds = array<i64: 8, 128>}]} {
    %c0 = arith.constant 0 : index
    %c0_0 = arith.constant 0 : index
    %0 = vector.load %arg2[%c0, %c0_0] : memref<56x32xf32, #tpu.memory_space<vmem>>, vector<56x32xf32>
    %1 = tpu.iota {dimensions = array<i32: 1>} : vector<8x56xi32>
    %c0_i32 = arith.constant 0 : i32
    %2 = vector.broadcast %c0_i32 : i32 to vector<8x56xi32>
    %3 = arith.addi %2, %1 : vector<8x56xi32>
    %c0_1 = arith.constant 0 : index
    %c0_2 = arith.constant 0 : index
    %4 = vector.load %arg1[%c0_1, %c0_2] : memref<8x4xi32, #tpu.memory_space<vmem>>, vector<8x1xi32>
    %5 = vector.broadcast %4 : vector<8x1xi32> to vector<8x56xi32>
    %6 = arith.cmpi eq, %5, %3 : vector<8x56xi32>
    %7 = arith.extui %6 : vector<8x56xi1> to vector<8x56xi32>
    %8 = arith.sitofp %7 : vector<8x56xi32> to vector<8x56xf32>
    %cst = arith.constant dense<0.000000e+00> : vector<8x32xf32>
    %9 = tpu.matmul %8, %0, %cst {dimension_numbers = #tpu.dot_dimension_numbers<[1], [0], [0], [1], [0, 0, 1, 1], [], []>} : vector<8x56xf32>, vector<56x32xf32>, vector<8x32xf32> -> vector<8x32xf32>
    %c0_3 = arith.constant 0 : index
    %c1 = arith.constant 1 : index
    %10 = vector.load %arg1[%c0_3, %c1] : memref<8x4xi32, #tpu.memory_space<vmem>>, vector<8x1xi32>
    %11 = vector.broadcast %10 : vector<8x1xi32> to vector<8x56xi32>
    %12 = arith.cmpi eq, %11, %3 : vector<8x56xi32>
    %13 = arith.extui %12 : vector<8x56xi1> to vector<8x56xi32>
    %14 = arith.sitofp %13 : vector<8x56xi32> to vector<8x56xf32>
    %cst_4 = arith.constant dense<0.000000e+00> : vector<8x32xf32>
    %15 = tpu.matmul %14, %0, %cst_4 {dimension_numbers = #tpu.dot_dimension_numbers<[1], [0], [0], [1], [0, 0, 1, 1], [], []>} : vector<8x56xf32>, vector<56x32xf32>, vector<8x32xf32> -> vector<8x32xf32>
    %c0_5 = arith.constant 0 : index
    %c2 = arith.constant 2 : index
    %16 = vector.load %arg1[%c0_5, %c2] : memref<8x4xi32, #tpu.memory_space<vmem>>, vector<8x1xi32>
    %17 = vector.broadcast %16 : vector<8x1xi32> to vector<8x56xi32>
    %18 = arith.cmpi eq, %17, %3 : vector<8x56xi32>
    %19 = arith.extui %18 : vector<8x56xi1> to vector<8x56xi32>
    %20 = arith.sitofp %19 : vector<8x56xi32> to vector<8x56xf32>
    %cst_6 = arith.constant dense<0.000000e+00> : vector<8x32xf32>
    %21 = tpu.matmul %20, %0, %cst_6 {dimension_numbers = #tpu.dot_dimension_numbers<[1], [0], [0], [1], [0, 0, 1, 1], [], []>} : vector<8x56xf32>, vector<56x32xf32>, vector<8x32xf32> -> vector<8x32xf32>
    %c0_7 = arith.constant 0 : index
    %c3 = arith.constant 3 : index
    %22 = vector.load %arg1[%c0_7, %c3] : memref<8x4xi32, #tpu.memory_space<vmem>>, vector<8x1xi32>
    %23 = vector.broadcast %22 : vector<8x1xi32> to vector<8x56xi32>
    %24 = arith.cmpi eq, %23, %3 : vector<8x56xi32>
    %25 = arith.extui %24 : vector<8x56xi1> to vector<8x56xi32>
    %26 = arith.sitofp %25 : vector<8x56xi32> to vector<8x56xf32>
    %cst_8 = arith.constant dense<0.000000e+00> : vector<8x32xf32>
    %27 = tpu.matmul %26, %0, %cst_8 {dimension_numbers = #tpu.dot_dimension_numbers<[1], [0], [0], [1], [0, 0, 1, 1], [], []>} : vector<8x56xf32>, vector<56x32xf32>, vector<8x32xf32> -> vector<8x32xf32>
    %28 = tpu.concatenate %9, %15, %21, %27 in 1 : vector<8x32xf32>, vector<8x32xf32>, vector<8x32xf32>, vector<8x32xf32> -> vector<8x128xf32>
    %c0_9 = arith.constant 0 : index
    %c0_10 = arith.constant 0 : index
    %29 = vector.load %arg3[%c0_9, %c0_10] : memref<8x128xf32, #tpu.memory_space<vmem>>, vector<8x128xf32>
    tpu.vector_store %arg3[%c0_9, %c0_10], %28 {strides = array<i32>} : memref<8x128xf32, #tpu.memory_space<vmem>>, vector<8x128xf32>,
    return
  }
  func.func @transform_0(%arg0: i32) -> (i32, i32) {
    %c0_i32 = arith.constant 0 : i32
    %c0_i32_0 = arith.constant 0 : i32
    return %arg0, %c0_i32 : i32, i32
  }
  func.func @transform_1(%arg0: i32) -> (i32, i32) {
    %c0_i32 = arith.constant 0 : i32
    %c0_i32_0 = arith.constant 0 : i32
    %c0_i32_1 = arith.constant 0 : i32
    return %c0_i32, %c0_i32_0 : i32, i32
  }
  func.func @transform_2(%arg0: i32) -> (i32, i32) {
    %c0_i32 = arith.constant 0 : i32
    %c0_i32_0 = arith.constant 0 : i32
    return %arg0, %c0_i32 : i32, i32
  }
}

</mosaic_0001>

<llo_original>
// kernel: tpu_custom_call.1
$region0: #{tpu_custom_call.1}
  #allocation0 [shape = 'u32[]', space=smem, size = 0x4, offset = 0x4, fixed_abs, tag = 'smem constant byte address 0x4 - core index']
  #allocation1 [shape = 'u32[72,128]{1,0:T(1,128)}', space=vmem, size = 0x9000, scoped, tag = 'internal scratch']
  %s0 = inlined_call_operand.vmem [shape: s32[8,4], index: 0, kind: input, shape index: {}]
  %s1 = inlined_call_operand.vmem [shape: f32[56,32], index: 1, kind: input, shape index: {}]
  %s2 = inlined_call_operand.hbm [shape: f32[8,128], index: 2, kind: output, shape index: {}]
  %s3 = sld [smem:[#allocation0]]
  $region18: #{tpu_custom_call.1} parent=0
    _
  %s5 = ssub.s32 1, %s3
  %s6 = scalar_select 0, %s5, %s3
  $region1: #{tpu_custom_call.1} parent=0
    #allocation2 [shape = 'u8[4096]{0}', space=vmem, size = 0x1000, scoped, tag = 'output window, operand 0, single buffered']
    #allocation3 [shape = 's32[1]{0}', space=sflag, size = 0x4, scoped, tag = 'scoped memory for tpu_custom_call.1']
    %7 = vsyncpa [#allocation3], 0
    // Predicated region
    $region2: #{tpu_custom_call.1} parent=1 // pred_check
      _
    $region3: #{tpu_custom_call.1} parent=1 // pred_check_branch
      %9 = sbr.rel (0) target = $region5
    $region4: #{tpu_custom_call.1} parent=1 // pred_region
      _
    $region5: #{tpu_custom_call.1} parent=1 // pred_fallthru
      _
    // Predicated region
    $region6: #{tpu_custom_call.1} parent=1 // pred_check
      _
    $region7: #{tpu_custom_call.1} parent=1 // pred_check_branch
      %11 = sbr.rel (0) target = $region9
    $region8: #{tpu_custom_call.1} parent=1 // pred_region
      _
    $region9: #{tpu_custom_call.1} parent=1 // pred_fallthru
      _
    %v12 = vld [vmem:[%s1] sm:$0xff]
    %v13 = vld [vmem:[%s1 + $0x8] sm:$0xff]
    %v14 = vld [vmem:[%s1 + $0x10] sm:$0xff]
    %v15 = vld [vmem:[%s1 + $0x18] sm:$0xff]
    %v16 = vld [vmem:[%s1 + $0x20] sm:$0xff]
    %v17 = vld [vmem:[%s1 + $0x28] sm:$0xff]
    %v18 = vld [vmem:[%s1 + $0x30] sm:$0xff]
    %v19 = vlaneseq
    %v20 = vand.u32 %v19, 127
    %v21 = vld [vmem:[%s0] sm:$0xff]
    %22 = vset.pattern.permute.xlu0 0
    %23 = vperm.xlu0 %22, %v21
    %v24 = vpop.permute.xlu0 %23
    %vm25 = vcmp.eq.s32.totalorder %v24, %v20
    %v26 = vsel %vm25, 1, 0
    %v27 = vcvt.s32.f32 %v26
    %vm28 = vcmask 457728
    %v30 = vsel %vm28, %v27, 0
    %32 = vmatpush.msra.mxu0 0.0
    %33 = vmatpush.msra.mxu0 0.0
    %34 = vmatpush.msra.mxu0 0.0
    %35 = vmatpush.msra.mxu0 0.0
    %36 = vmatpush.msra.mxu0 0.0
    %37 = vmatpush.msra.mxu0 0.0
    %38 = vmatpush.msra.mxu0 0.0
    %39 = vmatpush.msra.mxu0 0.0
    %40 = vmatpush.msra.mxu0 0.0
    %41 = vmatpush.msra.mxu0 %v18
    %42 = vmatpush.msra.mxu0 %v17
    %43 = vmatpush.msra.mxu0 %v16
    %44 = vmatpush.msra.mxu0 %v15
    %45 = vmatpush.msra.mxu0 %v14
    %46 = vmatpush.msra.mxu0 %v13
    %47 = vmatpush.msra.mxu0 %v12
    %48 = vmatmul.f32.gmra.mxu0 %v30
    %v49 = vpop.f32.mrf.mxu0
    %v50 = vadd.f32 0.0, %v49
    %51 = vdwg.mxu0
    %52 = vset.pattern.permute.xlu0 1
    %53 = vperm.xlu0 %52, %v21
    %v54 = vpop.permute.xlu0 %53
    %vm55 = vcmp.eq.s32.totalorder %v54, %v20
    %v56 = vsel %vm55, 1, 0
    %v57 = vcvt.s32.f32 %v56
    %v59 = vsel %vm28, %v57, 0
    %61 = vmatpush.msra.mxu0 0.0
    %62 = vmatpush.msra.mxu0 0.0
    %63 = vmatpush.msra.mxu0 0.0
    %64 = vmatpush.msra.mxu0 0.0
    %65 = vmatpush.msra.mxu0 0.0
    %66 = vmatpush.msra.mxu0 0.0
    %67 = vmatpush.msra.mxu0 0.0
    %68 = vmatpush.msra.mxu0 0.0
    %69 = vmatpush.msra.mxu0 0.0
    %70 = vmatpush.msra.mxu0 %v18
    %71 = vmatpush.msra.mxu0 %v17
    %72 = vmatpush.msra.mxu0 %v16
    %73 = vmatpush.msra.mxu0 %v15
    %74 = vmatpush.msra.mxu0 %v14
    %75 = vmatpush.msra.mxu0 %v13
    %76 = vmatpush.msra.mxu0 %v12
    %77 = vmatmul.f32.gmra.mxu0 %v59
    %v78 = vpop.f32.mrf.mxu0
    %v79 = vadd.f32 0.0, %v78
    %80 = vdwg.mxu0
    %81 = vset.pattern.permute.xlu0 2
    %82 = vperm.xlu0 %81, %v21
    %v83 = vpop.permute.xlu0 %82
    %vm84 = vcmp.eq.s32.totalorder %v83, %v20
    %v85 = vsel %vm84, 1, 0
    %v86 = vcvt.s32.f32 %v85
    %v88 = vsel %vm28, %v86, 0
    %90 = vmatpush.msra.mxu0 0.0
    %91 = vmatpush.msra.mxu0 0.0
    %92 = vmatpush.msra.mxu0 0.0
    %93 = vmatpush.msra.mxu0 0.0
    %94 = vmatpush.msra.mxu0 0.0
    %95 = vmatpush.msra.mxu0 0.0
    %96 = vmatpush.msra.mxu0 0.0
    %97 = vmatpush.msra.mxu0 0.0
    %98 = vmatpush.msra.mxu0 0.0
    %99 = vmatpush.msra.mxu0 %v18
    %100 = vmatpush.msra.mxu0 %v17
    %101 = vmatpush.msra.mxu0 %v16
    %102 = vmatpush.msra.mxu0 %v15
    %103 = vmatpush.msra.mxu0 %v14
    %104 = vmatpush.msra.mxu0 %v13
    %105 = vmatpush.msra.mxu0 %v12
    %106 = vmatmul.f32.gmra.mxu0 %v88
    %v107 = vpop.f32.mrf.mxu0
    %v108 = vadd.f32 0.0, %v107
    %109 = vdwg.mxu0
    %110 = vset.pattern.permute.xlu0 3
    %111 = vperm.xlu0 %110, %v21
    %v112 = vpop.permute.xlu0 %111
    %vm113 = vcmp.eq.s32.totalorder %v112, %v20
    %v114 = vsel %vm113, 1, 0
    %v115 = vcvt.s32.f32 %v114
    %v117 = vsel %vm28, %v115, 0
    %119 = vmatpush.msra.mxu0 0.0
    %120 = vmatpush.msra.mxu0 0.0
    %121 = vmatpush.msra.mxu0 0.0
    %122 = vmatpush.msra.mxu0 0.0
    %123 = vmatpush.msra.mxu0 0.0
    %124 = vmatpush.msra.mxu0 0.0
    %125 = vmatpush.msra.mxu0 0.0
    %126 = vmatpush.msra.mxu0 0.0
    %127 = vmatpush.msra.mxu0 0.0
    %128 = vmatpush.msra.mxu0 %v18
    %129 = vmatpush.msra.mxu0 %v17
    %130 = vmatpush.msra.mxu0 %v16
    %131 = vmatpush.msra.mxu0 %v15
    %132 = vmatpush.msra.mxu0 %v14
    %133 = vmatpush.msra.mxu0 %v13
    %134 = vmatpush.msra.mxu0 %v12
    %135 = vmatmul.f32.gmra.mxu0 %v117
    %v136 = vpop.f32.mrf.mxu0
    %v137 = vadd.f32 0.0, %v136
    %138 = vdwg.mxu0
    %140 = vrot.lane.b32.xlu0 %v79, 32
    %v141 = vpop.permute.xlu0 %140
    %144 = vrot.lane.b32.xlu0 %v108, 64
    %v145 = vpop.permute.xlu0 %144
    %148 = vrot.lane.b32.xlu0 %v137, 96
    %v149 = vpop.permute.xlu0 %148
    %vm151 = vcmask 261120
    %v152 = vsel %vm151, %v50, %v141
    %vm153 = vcmask 523264
    %v154 = vsel %vm153, %v152, %v145
    %vm155 = vcmask 785408
    %v156 = vsel %vm155, %v154, %v149
    %157 = vst [vmem:[#allocation2] sm:$0xff] %v156
    // Predicated region
    $region10: #{tpu_custom_call.1} parent=1 // pred_check
      _
    $region11: #{tpu_custom_call.1} parent=1 // pred_check_branch
      %159 = sbr.rel (0) target = $region13
    $region12: #{tpu_custom_call.1} parent=1 // pred_region
      %161 = vsyncadd [#allocation3], 0
      %s163 = sshll.u32 [#allocation2], 4
      %s164 = int_to_ptr.vmem [resolvable:$true] %s163
      %s165 = sshll.u32 %s2, 4
      %s166 = int_to_ptr.hbm [resolvable:$true] %s165
      %168 = dma.vmem_to_hbm [thread:$0]  %s164, 128, %s166, [#allocation3]
    $region13: #{tpu_custom_call.1} parent=1 // pred_fallthru
      _
    // Predicated region
    $region14: #{tpu_custom_call.1} parent=1 // pred_check
      _
    $region15: #{tpu_custom_call.1} parent=1 // pred_check_branch
      %170 = sbr.rel (0) target = $region17
    $region16: #{tpu_custom_call.1} parent=1 // pred_region
      %172 = dma.done [#allocation3], 128
    $region17: #{tpu_custom_call.1} parent=1 // pred_fallthru
      _
    %173 = vsyncpa [#allocation3], 1

// kernel: tpu_custom_call.1
$region0: #{tpu_custom_call.1}
  #allocation0 [shape = 'u32[]', space=smem, size = 0x4, offset = 0x4, fixed_abs, tag = 'smem constant byte address 0x4 - core index']
  #allocation1 [shape = 'u32[72,128]{1,0:T(1,128)}', space=vmem, size = 0x9000, scoped, tag = 'internal scratch']
  %s0 = inlined_call_operand.vmem [shape: s32[8,4], index: 0, kind: input, shape index: {}]
  %s1 = inlined_call_operand.vmem [shape: f32[56,32], index: 1, kind: input, shape index: {}]
  %s2 = inlined_call_operand.hbm [shape: f32[8,128], index: 2, kind: output, shape index: {}]
  %s3 = sld [smem:[#allocation0]]
  $region18: #{tpu_custom_call.1} parent=0
    _
  %s5 = ssub.s32 1, %s3
  %s6 = scalar_select 0, %s5, %s3
  $region1: #{tpu_custom_call.1} parent=0
    #allocation2 [shape = 'u8[4096]{0}', space=vmem, size = 0x1000, scoped, tag = 'output window, operand 0, single buffered']
    #allocation3 [shape = 's32[1]{0}', space=sflag, size = 0x4, scoped, tag = 'scoped memory for tpu_custom_call.1']
    %7 = vsyncpa [#allocation3], 0
    // Predicated region
    $region2: #{tpu_custom_call.1} parent=1 // pred_check
      _
    $region3: #{tpu_custom_call.1} parent=1 // pred_check_branch
      %9 = sbr.rel (0) target = $region5
    $region4: #{tpu_custom_call.1} parent=1 // pred_region
      _
    $region5: #{tpu_custom_call.1} parent=1 // pred_fallthru
      _
    // Predicated region
    $region6: #{tpu_custom_call.1} parent=1 // pred_check
      _
    $region7: #{tpu_custom_call.1} parent=1 // pred_check_branch
      %11 = sbr.rel (0) target = $region9
    $region8: #{tpu_custom_call.1} parent=1 // pred_region
      _
    $region9: #{tpu_custom_call.1} parent=1 // pred_fallthru
      _
    %v12 = vld [vmem:[%s1] sm:$0xff]
    %v13 = vld [vmem:[%s1 + $0x8] sm:$0xff]
    %v14 = vld [vmem:[%s1 + $0x10] sm:$0xff]
    %v15 = vld [vmem:[%s1 + $0x18] sm:$0xff]
    %v16 = vld [vmem:[%s1 + $0x20] sm:$0xff]
    %v17 = vld [vmem:[%s1 + $0x28] sm:$0xff]
    %v18 = vld [vmem:[%s1 + $0x30] sm:$0xff]
    %v19 = vlaneseq
    %v20 = vand.u32 %v19, 127
    %v21 = vld [vmem:[%s0] sm:$0xff]
    %22 = vset.pattern.permute.xlu0 0
    %23 = vperm.xlu0 %22, %v21
    %v24 = vpop.permute.xlu0 %23
    %vm25 = vcmp.eq.s32.totalorder %v24, %v20
    %v26 = vsel %vm25, 1, 0
    %v27 = vcvt.s32.f32 %v26
    %vm28 = vcmask 457728
    %v30 = vsel %vm28, %v27, 0
    %32 = vmatpush.msra.mxu0 0.0
    %33 = vmatpush.msra.mxu0 0.0
    %34 = vmatpush.msra.mxu0 0.0
    %35 = vmatpush.msra.mxu0 0.0
    %36 = vmatpush.msra.mxu0 0.0
    %37 = vmatpush.msra.mxu0 0.0
    %38 = vmatpush.msra.mxu0 0.0
    %39 = vmatpush.msra.mxu0 0.0
    %40 = vmatpush.msra.mxu0 0.0
    %41 = vmatpush.msra.mxu0 %v18
    %42 = vmatpush.msra.mxu0 %v17
    %43 = vmatpush.msra.mxu0 %v16
    %44 = vmatpush.msra.mxu0 %v15
    %45 = vmatpush.msra.mxu0 %v14
    %46 = vmatpush.msra.mxu0 %v13
    %47 = vmatpush.msra.mxu0 %v12
    %48 = vmatmul.f32.gmra.mxu0 %v30
    %v49 = vpop.f32.mrf.mxu0
    %v50 = vadd.f32 0.0, %v49
    %51 = vdwg.mxu0
    %52 = vset.pattern.permute.xlu0 1
    %53 = vperm.xlu0 %52, %v21
    %v54 = vpop.permute.xlu0 %53
    %vm55 = vcmp.eq.s32.totalorder %v54, %v20
    %v56 = vsel %vm55, 1, 0
    %v57 = vcvt.s32.f32 %v56
    %v59 = vsel %vm28, %v57, 0
    %61 = vmatpush.msra.mxu0 0.0
    %62 = vmatpush.msra.mxu0 0.0
    %63 = vmatpush.msra.mxu0 0.0
    %64 = vmatpush.msra.mxu0 0.0
    %65 = vmatpush.msra.mxu0 0.0
    %66 = vmatpush.msra.mxu0 0.0
    %67 = vmatpush.msra.mxu0 0.0
    %68 = vmatpush.msra.mxu0 0.0
    %69 = vmatpush.msra.mxu0 0.0
    %70 = vmatpush.msra.mxu0 %v18
    %71 = vmatpush.msra.mxu0 %v17
    %72 = vmatpush.msra.mxu0 %v16
    %73 = vmatpush.msra.mxu0 %v15
    %74 = vmatpush.msra.mxu0 %v14
    %75 = vmatpush.msra.mxu0 %v13
    %76 = vmatpush.msra.mxu0 %v12
    %77 = vmatmul.f32.gmra.mxu0 %v59
    %v78 = vpop.f32.mrf.mxu0
    %v79 = vadd.f32 0.0, %v78
    %80 = vdwg.mxu0
    %81 = vset.pattern.permute.xlu0 2
    %82 = vperm.xlu0 %81, %v21
    %v83 = vpop.permute.xlu0 %82
    %vm84 = vcmp.eq.s32.totalorder %v83, %v20
    %v85 = vsel %vm84, 1, 0
    %v86 = vcvt.s32.f32 %v85
    %v88 = vsel %vm28, %v86, 0
    %90 = vmatpush.msra.mxu0 0.0
    %91 = vmatpush.msra.mxu0 0.0
    %92 = vmatpush.msra.mxu0 0.0
    %93 = vmatpush.msra.mxu0 0.0
    %94 = vmatpush.msra.mxu0 0.0
    %95 = vmatpush.msra.mxu0 0.0
    %96 = vmatpush.msra.mxu0 0.0
    %97 = vmatpush.msra.mxu0 0.0
    %98 = vmatpush.msra.mxu0 0.0
    %99 = vmatpush.msra.mxu0 %v18
    %100 = vmatpush.msra.mxu0 %v17
    %101 = vmatpush.msra.mxu0 %v16
    %102 = vmatpush.msra.mxu0 %v15
    %103 = vmatpush.msra.mxu0 %v14
    %104 = vmatpush.msra.mxu0 %v13
    %105 = vmatpush.msra.mxu0 %v12
    %106 = vmatmul.f32.gmra.mxu0 %v88
    %v107 = vpop.f32.mrf.mxu0
    %v108 = vadd.f32 0.0, %v107
    %109 = vdwg.mxu0
    %110 = vset.pattern.permute.xlu0 3
    %111 = vperm.xlu0 %110, %v21
    %v112 = vpop.permute.xlu0 %111
    %vm113 = vcmp.eq.s32.totalorder %v112, %v20
    %v114 = vsel %vm113, 1, 0
    %v115 = vcvt.s32.f32 %v114
    %v117 = vsel %vm28, %v115, 0
    %119 = vmatpush.msra.mxu0 0.0
    %120 = vmatpush.msra.mxu0 0.0
    %121 = vmatpush.msra.mxu0 0.0
    %122 = vmatpush.msra.mxu0 0.0
    %123 = vmatpush.msra.mxu0 0.0
    %124 = vmatpush.msra.mxu0 0.0
    %125 = vmatpush.msra.mxu0 0.0
    %126 = vmatpush.msra.mxu0 0.0
    %127 = vmatpush.msra.mxu0 0.0
    %128 = vmatpush.msra.mxu0 %v18
    %129 = vmatpush.msra.mxu0 %v17
    %130 = vmatpush.msra.mxu0 %v16
    %131 = vmatpush.msra.mxu0 %v15
    %132 = vmatpush.msra.mxu0 %v14
    %133 = vmatpush.msra.mxu0 %v13
    %134 = vmatpush.msra.mxu0 %v12
    %135 = vmatmul.f32.gmra.mxu0 %v117
    %v136 = vpop.f32.mrf.mxu0
    %v137 = vadd.f32 0.0, %v136
    %138 = vdwg.mxu0
    %140 = vrot.lane.b32.xlu0 %v79, 32
    %v141 = vpop.permute.xlu0 %140
    %144 = vrot.lane.b32.xlu0 %v108, 64
    %v145 = vpop.permute.xlu0 %144
    %148 = vrot.lane.b32.xlu0 %v137, 96
    %v149 = vpop.permute.xlu0 %148
    %vm151 = vcmask 261120
    %v152 = vsel %vm151, %v50, %v141
    %vm153 = vcmask 523264
    %v154 = vsel %vm153, %v152, %v145
    %vm155 = vcmask 785408
    %v156 = vsel %vm155, %v154, %v149
    %157 = vst [vmem:[#allocation2] sm:$0xff] %v156
    // Predicated region
    $region10: #{tpu_custom_call.1} parent=1 // pred_check
      _
    $region11: #{tpu_custom_call.1} parent=1 // pred_check_branch
      %159 = sbr.rel (0) target = $region13
    $region12: #{tpu_custom_call.1} parent=1 // pred_region
      %161 = vsyncadd [#allocation3], 0
      %s163 = sshll.u32 [#allocation2], 4
      %s164 = int_to_ptr.vmem [resolvable:$true] %s163
      %s165 = sshll.u32 %s2, 4
      %s166 = int_to_ptr.hbm [resolvable:$true] %s165
      %168 = dma.vmem_to_hbm [thread:$0]  %s164, 128, %s166, [#allocation3]
    $region13: #{tpu_custom_call.1} parent=1 // pred_fallthru
      _
    // Predicated region
    $region14: #{tpu_custom_call.1} parent=1 // pred_check
      _
    $region15: #{tpu_custom_call.1} parent=1 // pred_check_branch
      %170 = sbr.rel (0) target = $region17
    $region16: #{tpu_custom_call.1} parent=1 // pred_region
      %172 = dma.done [#allocation3], 128
    $region17: #{tpu_custom_call.1} parent=1 // pred_fallthru
      _
    %173 = vsyncpa [#allocation3], 1

</llo_original>
